<compile_context>
chip_gen: v5e
topology: v5e:2x2
jax: 0.10.0
libtpu: 0.0.40
codegen_flags: <defaults>
</compile_context>

<pallas_src>
from functools import partial

import jax
import jax.numpy as jnp
from jax.experimental import pallas as pl
from jax.experimental.pallas import tpu as pltpu

LANE = 128               # TPU lane width
MAX_ROWS_PER_STEP = 4096  # conservative VMEM-derived row-tile cap (v5e/v6e/v7x)


def _round_up(n, m):
    return ((n + m - 1) // m) * m


def mlp_kernel(x_ref, w1_ref, b1_ref, w2_ref, b2_ref, o_ref):
    # First linear layer: MXU matmul with f32 accumulation.
    h = jnp.dot(x_ref[...], w1_ref[...], preferred_element_type=jnp.float32)
    # Bias add + ReLU kept in f32 (v5e VPU/EUP have no bf16 support).
    h = jnp.maximum(h + b1_ref[...], 0.0)
    # Second linear layer into the lane-padded (tile_b, 128) output slab.
    # Deliberate downcast of the hidden activation to the weight dtype
    # (no-op for f32 params, bf16 cast for bf16 params).
    y = jnp.dot(h.astype(w2_ref.dtype), w2_ref[...],
                preferred_element_type=jnp.float32)
    # Full-width, unmasked store (last dim is a multiple of 128 lanes).
    o_ref[...] = (y + b2_ref[...]).astype(o_ref.dtype)


def init_params(key, input_size, hidden_size, output_size, dtype=jnp.float32):
    """Deterministic init mimicking PyTorch nn.Linear defaults
    (uniform(-1/sqrt(fan_in), 1/sqrt(fan_in)))."""
    k1, k2, k3, k4 = jax.random.split(key, 4)
    bound1 = 1.0 / (input_size ** 0.5)
    bound2 = 1.0 / (hidden_size ** 0.5)
    w1 = jax.random.uniform(k1, (input_size, hidden_size), dtype, -bound1, bound1)
    b1 = jax.random.uniform(k2, (1, hidden_size), dtype, -bound1, bound1)
    w2 = jax.random.uniform(k3, (hidden_size, output_size), dtype, -bound2, bound2)
    b2 = jax.random.uniform(k4, (1, output_size), dtype, -bound2, bound2)
    return w1, b1, w2, b2


def prepare_params(w1, b1, w2, b2, compute_dtype=jnp.float32, lane=LANE):
    """One-time parameter prep:
      * zero-pad W2/b2 along the output (N) dim to a 128-lane multiple so the
        kernel's output stores are lane-dense (padded cols contribute zeros);
      * cast weights to `compute_dtype` (bf16 halves DMA bytes on v6e/v7x);
      * keep biases in f32 so bias math stays in f32 inside the kernel.
    """
    hidden, out = w2.shape
    n_pad = _round_up(out, lane)
    w1p = w1.astype(compute_dtype)
    b1p = b1.reshape(1, -1).astype(jnp.float32)
    w2p = jnp.zeros((hidden, n_pad), compute_dtype).at[:, :out].set(
        w2.astype(compute_dtype))
    b2p = jnp.zeros((1, n_pad), jnp.float32).at[:, :out].set(
        b2.reshape(1, out).astype(jnp.float32))
    return (w1p, b1p, w2p, b2p)


def _const_spec(shape, single_buffer):
    """BlockSpec for a VMEM-resident (grid-constant) operand.

    When the grid has more than one step, request single-buffering so the
    resident weights are not double-buffered (saves VMEM headroom for large
    row tiles). Falls back to a plain BlockSpec if pipeline_mode/Buffered is
    not available in the installed JAX version.
    """
    index_map = lambda i: (0, 0)
    if single_buffer:
        try:
            return pl.BlockSpec(shape, index_map, pipeline_mode=pl.Buffered(1))
        except (AttributeError, TypeError):
            pass
    return pl.BlockSpec(shape, index_map)


def net_forward(x, params):
    """Fused Linear -> ReLU -> Linear as a single Pallas kernel.

    Returns the lane-padded slab [batch_padded, n_pad] in f32; callers slice
    [:batch, :output_size] inside their own jit so the slice fuses (no extra
    launch just to drop the padding).
    """
    w1, b1, w2p, b2p = params
    batch, input_size = x.shape
    hidden_size = w1.shape[1]
    n_pad = w2p.shape[1]

    # Match activation dtype to the weight compute dtype (bf16 or f32).
    x = x.astype(w1.dtype)

    if batch <= MAX_ROWS_PER_STEP:
        # Overhead-dominated regime: run the entire batch in ONE grid step.
        # Full-dim blocks, so any (ragged) batch size is accepted directly.
        tile_b = batch
        padded_batch = batch
    else:
        # Large batch: split rows across the grid with an even grid length so
        # v7x megacore can shard steps across both TensorCores. 4096-row f32
        # tiles use ~7 MB of VMEM (incl. double-buffered x/out + resident
        # weights) — safely inside every generation's scoped-VMEM default.
        tile_b = MAX_ROWS_PER_STEP
        padded_batch = _round_up(batch, 2 * tile_b)

    if padded_batch != batch:
        x = jnp.zeros((padded_batch, input_size), x.dtype).at[:batch].set(x)

    grid = (padded_batch // tile_b,)
    single_buffer_weights = grid[0] > 1

    out_padded = pl.pallas_call(
        mlp_kernel,
        out_shape=jax.ShapeDtypeStruct((padded_batch, n_pad), jnp.float32),
        grid=grid,
        in_specs=[
            pl.BlockSpec((tile_b, input_size), lambda i: (i, 0)),       # x rows
            _const_spec((input_size, hidden_size), single_buffer_weights),  # W1
            _const_spec((1, hidden_size), single_buffer_weights),           # b1
            _const_spec((hidden_size, n_pad), single_buffer_weights),       # W2
            _const_spec((1, n_pad), single_buffer_weights),                 # b2
        ],
        out_specs=pl.BlockSpec((tile_b, n_pad), lambda i: (i, 0)),
        compiler_params=pltpu.CompilerParams(
            dimension_semantics=("parallel",)),
    )(x, w1, b1, w2p, b2p)

    return out_padded


@partial(jax.jit, static_argnames=("output_size",))
def net_apply(x, params, output_size):
    """End-to-end forward: kernel + fused (in-jit) slice back to real shape."""
    out_padded = net_forward(x, params)
    return out_padded[: x.shape[0], :output_size]


def _ref_forward(x, w1, b1, w2, b2, compute_dtype):
    """Pure-JAX reference mirroring the kernel's dtype chain."""
    xb = x.astype(compute_dtype)
    h = jnp.dot(xb, w1.astype(compute_dtype),
                preferred_element_type=jnp.float32)
    h = jnp.maximum(h + b1.reshape(1, -1).astype(jnp.float32), 0.0)
    y = jnp.dot(h.astype(compute_dtype), w2.astype(compute_dtype),
                preferred_element_type=jnp.float32)
    return y + b2.reshape(1, -1).astype(jnp.float32)


if __name__ == "__main__":
    # FrozenLake-style sizes: 16 observation features, 128 hidden, 4 actions.
    batch, input_size, hidden_size, output_size = 256, 16, 128, 4

    key = jax.random.PRNGKey(0)
    kx, kp = jax.random.split(key)
    x = jax.random.normal(kx, (batch, input_size), dtype=jnp.float32)
    w1, b1, w2, b2 = init_params(kp, input_size, hidden_size, output_size)

    # ---- f32 path (single grid step, batch=256) -------------------------
    params_f32 = prepare_params(w1, b1, w2, b2, compute_dtype=jnp.float32)
    out = net_apply(x, params_f32, output_size)
    jax.block_until_ready(out)
    ref = _ref_forward(x, w1, b1, w2, b2, jnp.float32)
    assert out.shape == (batch, output_size)
    assert jnp.allclose(out, ref, atol=1e-5, rtol=1e-5)

    # ---- bf16-weight path (v6e/v7x DMA-byte saving), ragged batch -------
    batch_bf16 = 200  # not a multiple of 8/128: exercised via full-dim blocks
    x_small = x[:batch_bf16]
    params_bf16 = prepare_params(w1, b1, w2, b2, compute_dtype=jnp.bfloat16)
    out_bf16 = net_apply(x_small, params_bf16, output_size)
    jax.block_until_ready(out_bf16)
    ref_bf16 = _ref_forward(x_small, w1, b1, w2, b2, jnp.bfloat16)
    assert out_bf16.shape == (batch_bf16, output_size)
    assert jnp.allclose(out_bf16, ref_bf16, atol=5e-3, rtol=5e-3)

    print("KERNEL_OK")
</pallas_src>

<mosaic_0001>
module attributes {stable_mosaic.version = 11 : i64} {
  func.func @mlp_kernel(%arg0: i32, %arg1: memref<256x16xf32, #tpu.memory_space<vmem>>, %arg2: memref<16x128xf32, #tpu.memory_space<vmem>>, %arg3: memref<1x128xf32, #tpu.memory_space<vmem>>, %arg4: memref<128x128xf32, #tpu.memory_space<vmem>>, %arg5: memref<1x128xf32, #tpu.memory_space<vmem>>, %arg6: memref<256x128xf32, #tpu.memory_space<vmem>>) attributes {dimension_semantics = [#tpu.dimension_semantics<parallel>], iteration_bounds = array<i64: 1>, scalar_prefetch = 0 : i64, scratch_operands = 0 : i64, tpu.core_type = #tpu.core_type<tc>, window_params = [{transform_indices = @transform_0, window_bounds = array<i64: 256, 16>}, {pipeline_mode = #tpu.pipeline_mode<synchronous>, transform_indices = @transform_1, window_bounds = array<i64: 16, 128>}, {pipeline_mode = #tpu.pipeline_mode<synchronous>, transform_indices = @transform_2, window_bounds = array<i64: 1, 128>}, {pipeline_mode = #tpu.pipeline_mode<synchronous>, transform_indices = @transform_3, window_bounds = array<i64: 128, 128>}, {pipeline_mode = #tpu.pipeline_mode<synchronous>, transform_indices = @transform_4, window_bounds = array<i64: 1, 128>}, {transform_indices = @transform_5, window_bounds = array<i64: 256, 128>}]} {
    %c0 = arith.constant 0 : index
    %c0_0 = arith.constant 0 : index
    %0 = vector.load %arg1[%c0, %c0_0] : memref<256x16xf32, #tpu.memory_space<vmem>>, vector<256x16xf32>
    %c0_1 = arith.constant 0 : index
    %c0_2 = arith.constant 0 : index
    %1 = vector.load %arg2[%c0_1, %c0_2] : memref<16x128xf32, #tpu.memory_space<vmem>>, vector<16x128xf32>
    %cst = arith.constant dense<0.000000e+00> : vector<256x128xf32>
    %2 = tpu.matmul %0, %1, %cst {dimension_numbers = #tpu.dot_dimension_numbers<[1], [0], [0], [1], [0, 0, 1, 1], [], []>} : vector<256x16xf32>, vector<16x128xf32>, vector<256x128xf32> -> vector<256x128xf32>
    %c0_3 = arith.constant 0 : index
    %c0_4 = arith.constant 0 : index
    %3 = vector.load %arg3[%c0_3, %c0_4] : memref<1x128xf32, #tpu.memory_space<vmem>>, vector<1x128xf32>
    %4 = vector.broadcast %3 : vector<1x128xf32> to vector<256x128xf32>
    %5 = arith.addf %2, %4 : vector<256x128xf32>
    %cst_5 = arith.constant 0.000000e+00 : f32
    %6 = vector.broadcast %cst_5 : f32 to vector<256x128xf32>
    %7 = arith.maximumf %5, %6 : vector<256x128xf32>
    %c0_6 = arith.constant 0 : index
    %c0_7 = arith.constant 0 : index
    %8 = vector.load %arg4[%c0_6, %c0_7] : memref<128x128xf32, #tpu.memory_space<vmem>>, vector<128x128xf32>
    %cst_8 = arith.constant dense<0.000000e+00> : vector<256x128xf32>
    %9 = tpu.matmul %7, %8, %cst_8 {dimension_numbers = #tpu.dot_dimension_numbers<[1], [0], [0], [1], [0, 0, 1, 1], [], []>} : vector<256x128xf32>, vector<128x128xf32>, vector<256x128xf32> -> vector<256x128xf32>
    %c0_9 = arith.constant 0 : index
    %c0_10 = arith.constant 0 : index
    %10 = vector.load %arg5[%c0_9, %c0_10] : memref<1x128xf32, #tpu.memory_space<vmem>>, vector<1x128xf32>
    %11 = vector.broadcast %10 : vector<1x128xf32> to vector<256x128xf32>
    %12 = arith.addf %9, %11 : vector<256x128xf32>
    %c0_11 = arith.constant 0 : index
    %c0_12 = arith.constant 0 : index
    %13 = vector.load %arg6[%c0_11, %c0_12] : memref<256x128xf32, #tpu.memory_space<vmem>>, vector<256x128xf32>
    tpu.vector_store %arg6[%c0_11, %c0_12], %12 {strides = array<i32>} : memref<256x128xf32, #tpu.memory_space<vmem>>, vector<256x128xf32>,
    return
  }
  func.func @transform_0(%arg0: i32) -> (i32, i32) {
    %c0_i32 = arith.constant 0 : i32
    %c0_i32_0 = arith.constant 0 : i32
    return %arg0, %c0_i32 : i32, i32
  }
  func.func @transform_1(%arg0: i32) -> (i32, i32) {
    %c0_i32 = arith.constant 0 : i32
    %c0_i32_0 = arith.constant 0 : i32
    %c0_i32_1 = arith.constant 0 : i32
    return %c0_i32, %c0_i32_0 : i32, i32
  }
  func.func @transform_2(%arg0: i32) -> (i32, i32) {
    %c0_i32 = arith.constant 0 : i32
    %c0_i32_0 = arith.constant 0 : i32
    %c0_i32_1 = arith.constant 0 : i32
    return %c0_i32, %c0_i32_0 : i32, i32
  }
  func.func @transform_3(%arg0: i32) -> (i32, i32) {
    %c0_i32 = arith.constant 0 : i32
    %c0_i32_0 = arith.constant 0 : i32
    %c0_i32_1 = arith.constant 0 : i32
    return %c0_i32, %c0_i32_0 : i32, i32
  }
  func.func @transform_4(%arg0: i32) -> (i32, i32) {
    %c0_i32 = arith.constant 0 : i32
    %c0_i32_0 = arith.constant 0 : i32
    %c0_i32_1 = arith.constant 0 : i32
    return %c0_i32, %c0_i32_0 : i32, i32
  }
  func.func @transform_5(%arg0: i32) -> (i32, i32) {
    %c0_i32 = arith.constant 0 : i32
    %c0_i32_0 = arith.constant 0 : i32
    return %arg0, %c0_i32 : i32, i32
  }
}

</mosaic_0001>

<llo_original>
// kernel: net_apply.1
$region0: #{net_apply.1}
  #allocation0 [shape = 'u32[]', space=smem, size = 0x4, offset = 0x4, fixed_abs, tag = 'smem constant byte address 0x4 - core index']
  #allocation1 [shape = 'u32[72,128]{1,0:T(1,128)}', space=vmem, size = 0x9000, scoped, tag = 'internal scratch']
  %s0 = inlined_call_operand.vmem [shape: f32[256,16], index: 0, kind: input, shape index: {}]
  %s1 = inlined_call_operand.vmem [shape: f32[16,128], index: 1, kind: input, shape index: {}]
  %s2 = inlined_call_operand.vmem [shape: f32[1,128], index: 2, kind: input, shape index: {}]
  %s3 = inlined_call_operand.vmem [shape: f32[128,128], index: 3, kind: input, shape index: {}]
  %s4 = inlined_call_operand.vmem [shape: f32[1,128], index: 4, kind: input, shape index: {}]
  %s5 = inlined_call_operand.vmem [shape: f32[256,128], index: 5, kind: output, shape index: {}]
  %s6 = sld [smem:[#allocation0]]
  $region30: #{net_apply.1} parent=0
    _
  %s8 = ssub.s32 1, %s6
  %s9 = scalar_select 0, %s8, %s6
  // Predicated region
  $region2: #{net_apply.1} parent=0 // pred_check
    _
  $region3: #{net_apply.1} parent=0 // pred_check_branch
    %11 = sbr.rel (0) target = $region5
  $region4: #{net_apply.1} parent=0 // pred_region
    _
  $region5: #{net_apply.1} parent=0 // pred_fallthru
    _
  // Predicated region
  $region6: #{net_apply.1} parent=0 // pred_check
    _
  $region7: #{net_apply.1} parent=0 // pred_check_branch
    %13 = sbr.rel (0) target = $region9
  $region8: #{net_apply.1} parent=0 // pred_region
    _
  $region9: #{net_apply.1} parent=0 // pred_fallthru
    _
  // Predicated region
  $region10: #{net_apply.1} parent=0 // pred_check
    _
  $region11: #{net_apply.1} parent=0 // pred_check_branch
    %15 = sbr.rel (0) target = $region13
  $region12: #{net_apply.1} parent=0 // pred_region
    _
  $region13: #{net_apply.1} parent=0 // pred_fallthru
    _
  // Predicated region
  $region14: #{net_apply.1} parent=0 // pred_check
    _
  $region15: #{net_apply.1} parent=0 // pred_check_branch
    %17 = sbr.rel (0) target = $region17
  $region16: #{net_apply.1} parent=0 // pred_region
    _
  $region17: #{net_apply.1} parent=0 // pred_fallthru
    _
  // Predicated region
  $region18: #{net_apply.1} parent=0 // pred_check
    _
  $region19: #{net_apply.1} parent=0 // pred_check_branch
    %19 = sbr.rel (0) target = $region21
  $region20: #{net_apply.1} parent=0 // pred_region
    _
  $region21: #{net_apply.1} parent=0 // pred_fallthru
    _
  %v20 = vld [vmem:[%s0] sm:$0xff]
  %v21 = vld [vmem:[%s0 + $0x8] sm:$0xff]
  %v22 = vld [vmem:[%s0 + $0x10] sm:$0xff]
  %v23 = vld [vmem:[%s0 + $0x18] sm:$0xff]
  %v24 = vld [vmem:[%s0 + $0x20] sm:$0xff]
  %v25 = vld [vmem:[%s0 + $0x28] sm:$0xff]
  %v26 = vld [vmem:[%s0 + $0x30] sm:$0xff]
  %v27 = vld [vmem:[%s0 + $0x38] sm:$0xff]
  %v28 = vld [vmem:[%s0 + $0x40] sm:$0xff]
  %v29 = vld [vmem:[%s0 + $0x48] sm:$0xff]
  %v30 = vld [vmem:[%s0 + $0x50] sm:$0xff]
  %v31 = vld [vmem:[%s0 + $0x58] sm:$0xff]
  %v32 = vld [vmem:[%s0 + $0x60] sm:$0xff]
  %v33 = vld [vmem:[%s0 + $0x68] sm:$0xff]
  %v34 = vld [vmem:[%s0 + $0x70] sm:$0xff]
  %v35 = vld [vmem:[%s0 + $0x78] sm:$0xff]
  %v36 = vld [vmem:[%s0 + $0x80] sm:$0xff]
  %v37 = vld [vmem:[%s0 + $0x88] sm:$0xff]
  %v38 = vld [vmem:[%s0 + $0x90] sm:$0xff]
  %v39 = vld [vmem:[%s0 + $0x98] sm:$0xff]
  %v40 = vld [vmem:[%s0 + $0xa0] sm:$0xff]
  %v41 = vld [vmem:[%s0 + $0xa8] sm:$0xff]
  %v42 = vld [vmem:[%s0 + $0xb0] sm:$0xff]
  %v43 = vld [vmem:[%s0 + $0xb8] sm:$0xff]
  %v44 = vld [vmem:[%s0 + $0xc0] sm:$0xff]
  %v45 = vld [vmem:[%s0 + $0xc8] sm:$0xff]
  %v46 = vld [vmem:[%s0 + $0xd0] sm:$0xff]
  %v47 = vld [vmem:[%s0 + $0xd8] sm:$0xff]
  %v48 = vld [vmem:[%s0 + $0xe0] sm:$0xff]
  %v49 = vld [vmem:[%s0 + $0xe8] sm:$0xff]
  %v50 = vld [vmem:[%s0 + $0xf0] sm:$0xff]
  %v51 = vld [vmem:[%s0 + $0xf8] sm:$0xff]
  %v52 = vld [vmem:[%s1] sm:$0xff]
  %v53 = vld [vmem:[%s1 + $0x8] sm:$0xff]
  %v54 = vld [vmem:[%s2] sm:$0x1]
  %v56 = vperm.slane %v54, 0
  %vm58 = vcmask 130048
  %v60 = vsel %vm58, %v20, 0
  %v63 = vsel %vm58, %v21, 0
  %v66 = vsel %vm58, %v22, 0
  %v69 = vsel %vm58, %v23, 0
  %v72 = vsel %vm58, %v24, 0
  %v75 = vsel %vm58, %v25, 0
  %v78 = vsel %vm58, %v26, 0
  %v81 = vsel %vm58, %v27, 0
  %v84 = vsel %vm58, %v28, 0
  %v87 = vsel %vm58, %v29, 0
  %v90 = vsel %vm58, %v30, 0
  %v93 = vsel %vm58, %v31, 0
  %v96 = vsel %vm58, %v32, 0
  %v99 = vsel %vm58, %v33, 0
  %v102 = vsel %vm58, %v34, 0
  %v105 = vsel %vm58, %v35, 0
  %v108 = vsel %vm58, %v36, 0
  %v111 = vsel %vm58, %v37, 0
  %v114 = vsel %vm58, %v38, 0
  %v117 = vsel %vm58, %v39, 0
  %v120 = vsel %vm58, %v40, 0
  %v123 = vsel %vm58, %v41, 0
  %v126 = vsel %vm58, %v42, 0
  %v129 = vsel %vm58, %v43, 0
  %v132 = vsel %vm58, %v44, 0
  %v135 = vsel %vm58, %v45, 0
  %v138 = vsel %vm58, %v46, 0
  %v141 = vsel %vm58, %v47, 0
  %v144 = vsel %vm58, %v48, 0
  %v147 = vsel %vm58, %v49, 0
  %v150 = vsel %vm58, %v50, 0
  %v153 = vsel %vm58, %v51, 0
  %155 = vmatpush.msra.mxu0 0.0
  %156 = vmatpush.msra.mxu0 0.0
  %157 = vmatpush.msra.mxu0 0.0
  %158 = vmatpush.msra.mxu0 0.0
  %159 = vmatpush.msra.mxu0 0.0
  %160 = vmatpush.msra.mxu0 0.0
  %161 = vmatpush.msra.mxu0 0.0
  %162 = vmatpush.msra.mxu0 0.0
  %163 = vmatpush.msra.mxu0 0.0
  %164 = vmatpush.msra.mxu0 0.0
  %165 = vmatpush.msra.mxu0 0.0
  %166 = vmatpush.msra.mxu0 0.0
  %167 = vmatpush.msra.mxu0 0.0
  %168 = vmatpush.msra.mxu0 0.0
  %169 = vmatpush.msra.mxu0 %v53
  %170 = vmatpush.msra.mxu0 %v52
  %171 = vmatmul.f32.gmra.mxu0 %v60
  %v172 = vpop.f32.mrf.mxu0
  %v173 = vadd.f32 %v56, %v172
  %174 = vmatmul.f32.gmra.mxu0 %v63
  %v175 = vpop.f32.mrf.mxu0
  %v176 = vadd.f32 %v56, %v175
  %177 = vmatmul.f32.gmra.mxu0 %v66
  %v178 = vpop.f32.mrf.mxu0
  %v179 = vadd.f32 %v56, %v178
  %180 = vmatmul.f32.gmra.mxu0 %v69
  %v181 = vpop.f32.mrf.mxu0
  %v182 = vadd.f32 %v56, %v181
  %183 = vmatmul.f32.gmra.mxu0 %v72
  %v184 = vpop.f32.mrf.mxu0
  %v185 = vadd.f32 %v56, %v184
  %186 = vmatmul.f32.gmra.mxu0 %v75
  %v187 = vpop.f32.mrf.mxu0
  %v188 = vadd.f32 %v56, %v187
  %189 = vmatmul.f32.gmra.mxu0 %v78
  %v190 = vpop.f32.mrf.mxu0
  %v191 = vadd.f32 %v56, %v190
  %192 = vmatmul.f32.gmra.mxu0 %v81
  %v193 = vpop.f32.mrf.mxu0
  %v194 = vadd.f32 %v56, %v193
  %195 = vmatmul.f32.gmra.mxu0 %v84
  %v196 = vpop.f32.mrf.mxu0
  %v197 = vadd.f32 %v56, %v196
  %198 = vmatmul.f32.gmra.mxu0 %v87
  %v199 = vpop.f32.mrf.mxu0
  %v200 = vadd.f32 %v56, %v199
  %201 = vmatmul.f32.gmra.mxu0 %v90
  %v202 = vpop.f32.mrf.mxu0
  %v203 = vadd.f32 %v56, %v202
  %204 = vmatmul.f32.gmra.mxu0 %v93
  %v205 = vpop.f32.mrf.mxu0
  %v206 = vadd.f32 %v56, %v205
  %207 = vmatmul.f32.gmra.mxu0 %v96
  %v208 = vpop.f32.mrf.mxu0
  %v209 = vadd.f32 %v56, %v208
  %210 = vmatmul.f32.gmra.mxu0 %v99
  %v211 = vpop.f32.mrf.mxu0
  %v212 = vadd.f32 %v56, %v211
  %213 = vmatmul.f32.gmra.mxu0 %v102
  %v214 = vpop.f32.mrf.mxu0
  %v215 = vadd.f32 %v56, %v214
  %216 = vmatmul.f32.gmra.mxu0 %v105
  %v217 = vpop.f32.mrf.mxu0
  %v218 = vadd.f32 %v56, %v217
  %219 = vmatmul.f32.gmra.mxu0 %v108
  %v220 = vpop.f32.mrf.mxu0
  %v221 = vadd.f32 %v56, %v220
  %222 = vmatmul.f32.gmra.mxu0 %v111
  %v223 = vpop.f32.mrf.mxu0
  %v224 = vadd.f32 %v56, %v223
  %225 = vmatmul.f32.gmra.mxu0 %v114
  %v226 = vpop.f32.mrf.mxu0
  %v227 = vadd.f32 %v56, %v226
  %228 = vmatmul.f32.gmra.mxu0 %v117
  %v229 = vpop.f32.mrf.mxu0
  %v230 = vadd.f32 %v56, %v229
  %231 = vmatmul.f32.gmra.mxu0 %v120
  %v232 = vpop.f32.mrf.mxu0
  %v233 = vadd.f32 %v56, %v232
  %234 = vmatmul.f32.gmra.mxu0 %v123
  %v235 = vpop.f32.mrf.mxu0
  %v236 = vadd.f32 %v56, %v235
  %237 = vmatmul.f32.gmra.mxu0 %v126
  %v238 = vpop.f32.mrf.mxu0
  %v239 = vadd.f32 %v56, %v238
  %240 = vmatmul.f32.gmra.mxu0 %v129
  %v241 = vpop.f32.mrf.mxu0
  %v242 = vadd.f32 %v56, %v241
  %243 = vmatmul.f32.gmra.mxu0 %v132
  %v244 = vpop.f32.mrf.mxu0
  %v245 = vadd.f32 %v56, %v244
  %246 = vmatmul.f32.gmra.mxu0 %v135
  %v247 = vpop.f32.mrf.mxu0
  %v248 = vadd.f32 %v56, %v247
  %249 = vmatmul.f32.gmra.mxu0 %v138
  %v250 = vpop.f32.mrf.mxu0
  %v251 = vadd.f32 %v56, %v250
  %252 = vmatmul.f32.gmra.mxu0 %v141
  %v253 = vpop.f32.mrf.mxu0
  %v254 = vadd.f32 %v56, %v253
  %255 = vmatmul.f32.gmra.mxu0 %v144
  %v256 = vpop.f32.mrf.mxu0
  %v257 = vadd.f32 %v56, %v256
  %258 = vmatmul.f32.gmra.mxu0 %v147
  %v259 = vpop.f32.mrf.mxu0
  %v260 = vadd.f32 %v56, %v259
  %261 = vmatmul.f32.gmra.mxu0 %v150
  %v262 = vpop.f32.mrf.mxu0
  %v263 = vadd.f32 %v56, %v262
  %264 = vmatmul.f32.gmra.mxu0 %v153
  %v265 = vpop.f32.mrf.mxu0
  %v266 = vadd.f32 %v56, %v265
  %267 = vdwg.mxu0
  %v268 = vmax.f32 %v173, 0.0
  %v269 = vmax.f32 %v176, 0.0
  %v270 = vmax.f32 %v179, 0.0
  %v271 = vmax.f32 %v182, 0.0
  %v272 = vmax.f32 %v185, 0.0
  %v273 = vmax.f32 %v188, 0.0
  %v274 = vmax.f32 %v191, 0.0
  %v275 = vmax.f32 %v194, 0.0
  %v276 = vmax.f32 %v197, 0.0
  %v277 = vmax.f32 %v200, 0.0
  %v278 = vmax.f32 %v203, 0.0
  %v279 = vmax.f32 %v206, 0.0
  %v280 = vmax.f32 %v209, 0.0
  %v281 = vmax.f32 %v212, 0.0
  %v282 = vmax.f32 %v215, 0.0
  %v283 = vmax.f32 %v218, 0.0
  %v284 = vmax.f32 %v221, 0.0
  %v285 = vmax.f32 %v224, 0.0
  %v286 = vmax.f32 %v227, 0.0
  %v287 = vmax.f32 %v230, 0.0
  %v288 = vmax.f32 %v233, 0.0
  %v289 = vmax.f32 %v236, 0.0
  %v290 = vmax.f32 %v239, 0.0
  %v291 = vmax.f32 %v242, 0.0
  %v292 = vmax.f32 %v245, 0.0
  %v293 = vmax.f32 %v248, 0.0
  %v294 = vmax.f32 %v251, 0.0
  %v295 = vmax.f32 %v254, 0.0
  %v296 = vmax.f32 %v257, 0.0
  %v297 = vmax.f32 %v260, 0.0
  %v298 = vmax.f32 %v263, 0.0
  %v299 = vmax.f32 %v266, 0.0
  %v300 = vld [vmem:[%s3] sm:$0xff]
  %v301 = vld [vmem:[%s3 + $0x8] sm:$0xff]
  %v302 = vld [vmem:[%s3 + $0x10] sm:$0xff]
  %v303 = vld [vmem:[%s3 + $0x18] sm:$0xff]
  %v304 = vld [vmem:[%s3 + $0x20] sm:$0xff]
  %v305 = vld [vmem:[%s3 + $0x28] sm:$0xff]
  %v306 = vld [vmem:[%s3 + $0x30] sm:$0xff]
  %v307 = vld [vmem:[%s3 + $0x38] sm:$0xff]
  %v308 = vld [vmem:[%s3 + $0x40] sm:$0xff]
  %v309 = vld [vmem:[%s3 + $0x48] sm:$0xff]
  %v310 = vld [vmem:[%s3 + $0x50] sm:$0xff]
  %v311 = vld [vmem:[%s3 + $0x58] sm:$0xff]
  %v312 = vld [vmem:[%s3 + $0x60] sm:$0xff]
  %v313 = vld [vmem:[%s3 + $0x68] sm:$0xff]
  %v314 = vld [vmem:[%s3 + $0x70] sm:$0xff]
  %v315 = vld [vmem:[%s3 + $0x78] sm:$0xff]
  %v316 = vld [vmem:[%s4] sm:$0x1]
  %v318 = vperm.slane %v316, 0
  %320 = vmatpush.msra.mxu0 %v315
  %321 = vmatpush.msra.mxu0 %v314
  %322 = vmatpush.msra.mxu0 %v313
  %323 = vmatpush.msra.mxu0 %v312
  %324 = vmatpush.msra.mxu0 %v311
  %325 = vmatpush.msra.mxu0 %v310
  %326 = vmatpush.msra.mxu0 %v309
  %327 = vmatpush.msra.mxu0 %v308
  %328 = vmatpush.msra.mxu0 %v307
  %329 = vmatpush.msra.mxu0 %v306
  %330 = vmatpush.msra.mxu0 %v305
  %331 = vmatpush.msra.mxu0 %v304
  %332 = vmatpush.msra.mxu0 %v303
  %333 = vmatpush.msra.mxu0 %v302
  %334 = vmatpush.msra.mxu0 %v301
  %335 = vmatpush.msra.mxu0 %v300
  %336 = vmatmul.f32.gmra.mxu0 %v268
  %v337 = vpop.f32.mrf.mxu0
  %v338 = vadd.f32 %v318, %v337
  %339 = vmatmul.f32.gmra.mxu0 %v269
  %v340 = vpop.f32.mrf.mxu0
  %v341 = vadd.f32 %v318, %v340
  %342 = vmatmul.f32.gmra.mxu0 %v270
  %v343 = vpop.f32.mrf.mxu0
  %v344 = vadd.f32 %v318, %v343
  %345 = vmatmul.f32.gmra.mxu0 %v271
  %v346 = vpop.f32.mrf.mxu0
  %v347 = vadd.f32 %v318, %v346
  %348 = vmatmul.f32.gmra.mxu0 %v272
  %v349 = vpop.f32.mrf.mxu0
  %v350 = vadd.f32 %v318, %v349
  %351 = vmatmul.f32.gmra.mxu0 %v273
  %v352 = vpop.f32.mrf.mxu0
  %v353 = vadd.f32 %v318, %v352
  %354 = vmatmul.f32.gmra.mxu0 %v274
  %v355 = vpop.f32.mrf.mxu0
  %v356 = vadd.f32 %v318, %v355
  %357 = vmatmul.f32.gmra.mxu0 %v275
  %v358 = vpop.f32.mrf.mxu0
  %v359 = vadd.f32 %v318, %v358
  %360 = vmatmul.f32.gmra.mxu0 %v276
  %v361 = vpop.f32.mrf.mxu0
  %v362 = vadd.f32 %v318, %v361
  %363 = vmatmul.f32.gmra.mxu0 %v277
  %v364 = vpop.f32.mrf.mxu0
  %v365 = vadd.f32 %v318, %v364
  %366 = vmatmul.f32.gmra.mxu0 %v278
  %v367 = vpop.f32.mrf.mxu0
  %v368 = vadd.f32 %v318, %v367
  %369 = vmatmul.f32.gmra.mxu0 %v279
  %v370 = vpop.f32.mrf.mxu0
  %v371 = vadd.f32 %v318, %v370
  %372 = vmatmul.f32.gmra.mxu0 %v280
  %v373 = vpop.f32.mrf.mxu0
  %v374 = vadd.f32 %v318, %v373
  %375 = vmatmul.f32.gmra.mxu0 %v281
  %v376 = vpop.f32.mrf.mxu0
  %v377 = vadd.f32 %v318, %v376
  %378 = vmatmul.f32.gmra.mxu0 %v282
  %v379 = vpop.f32.mrf.mxu0
  %v380 = vadd.f32 %v318, %v379
  %381 = vmatmul.f32.gmra.mxu0 %v283
  %v382 = vpop.f32.mrf.mxu0
  %v383 = vadd.f32 %v318, %v382
  %384 = vmatmul.f32.gmra.mxu0 %v284
  %v385 = vpop.f32.mrf.mxu0
  %v386 = vadd.f32 %v318, %v385
  %387 = vmatmul.f32.gmra.mxu0 %v285
  %v388 = vpop.f32.mrf.mxu0
  %v389 = vadd.f32 %v318, %v388
  %390 = vmatmul.f32.gmra.mxu0 %v286
  %v391 = vpop.f32.mrf.mxu0
  %v392 = vadd.f32 %v318, %v391
  %393 = vmatmul.f32.gmra.mxu0 %v287
  %v394 = vpop.f32.mrf.mxu0
  %v395 = vadd.f32 %v318, %v394
  %396 = vmatmul.f32.gmra.mxu0 %v288
  %v397 = vpop.f32.mrf.mxu0
  %v398 = vadd.f32 %v318, %v397
  %399 = vmatmul.f32.gmra.mxu0 %v289
  %v400 = vpop.f32.mrf.mxu0
  %v401 = vadd.f32 %v318, %v400
  %402 = vmatmul.f32.gmra.mxu0 %v290
  %v403 = vpop.f32.mrf.mxu0
  %v404 = vadd.f32 %v318, %v403
  %405 = vmatmul.f32.gmra.mxu0 %v291
  %v406 = vpop.f32.mrf.mxu0
  %v407 = vadd.f32 %v318, %v406
  %408 = vmatmul.f32.gmra.mxu0 %v292
  %v409 = vpop.f32.mrf.mxu0
  %v410 = vadd.f32 %v318, %v409
  %411 = vmatmul.f32.gmra.mxu0 %v293
  %v412 = vpop.f32.mrf.mxu0
  %v413 = vadd.f32 %v318, %v412
  %414 = vmatmul.f32.gmra.mxu0 %v294
  %v415 = vpop.f32.mrf.mxu0
  %v416 = vadd.f32 %v318, %v415
  %417 = vmatmul.f32.gmra.mxu0 %v295
  %v418 = vpop.f32.mrf.mxu0
  %v419 = vadd.f32 %v318, %v418
  %420 = vmatmul.f32.gmra.mxu0 %v296
  %v421 = vpop.f32.mrf.mxu0
  %v422 = vadd.f32 %v318, %v421
  %423 = vmatmul.f32.gmra.mxu0 %v297
  %v424 = vpop.f32.mrf.mxu0
  %v425 = vadd.f32 %v318, %v424
  %426 = vmatmul.f32.gmra.mxu0 %v298
  %v427 = vpop.f32.mrf.mxu0
  %v428 = vadd.f32 %v318, %v427
  %429 = vmatmul.f32.gmra.mxu0 %v299
  %v430 = vpop.f32.mrf.mxu0
  %v431 = vadd.f32 %v318, %v430
  %432 = vdwg.mxu0
  %433 = vst [vmem:[%s5] sm:$0xff] %v338
  %434 = vst [vmem:[%s5 + $0x8] sm:$0xff] %v341
  %435 = vst [vmem:[%s5 + $0x10] sm:$0xff] %v344
  %436 = vst [vmem:[%s5 + $0x18] sm:$0xff] %v347
  %437 = vst [vmem:[%s5 + $0x20] sm:$0xff] %v350
  %438 = vst [vmem:[%s5 + $0x28] sm:$0xff] %v353
  %439 = vst [vmem:[%s5 + $0x30] sm:$0xff] %v356
  %440 = vst [vmem:[%s5 + $0x38] sm:$0xff] %v359
  %441 = vst [vmem:[%s5 + $0x40] sm:$0xff] %v362
  %442 = vst [vmem:[%s5 + $0x48] sm:$0xff] %v365
  %443 = vst [vmem:[%s5 + $0x50] sm:$0xff] %v368
  %444 = vst [vmem:[%s5 + $0x58] sm:$0xff] %v371
  %445 = vst [vmem:[%s5 + $0x60] sm:$0xff] %v374
  %446 = vst [vmem:[%s5 + $0x68] sm:$0xff] %v377
  %447 = vst [vmem:[%s5 + $0x70] sm:$0xff] %v380
  %448 = vst [vmem:[%s5 + $0x78] sm:$0xff] %v383
  %449 = vst [vmem:[%s5 + $0x80] sm:$0xff] %v386
  %450 = vst [vmem:[%s5 + $0x88] sm:$0xff] %v389
  %451 = vst [vmem:[%s5 + $0x90] sm:$0xff] %v392
  %452 = vst [vmem:[%s5 + $0x98] sm:$0xff] %v395
  %453 = vst [vmem:[%s5 + $0xa0] sm:$0xff] %v398
  %454 = vst [vmem:[%s5 + $0xa8] sm:$0xff] %v401
  %455 = vst [vmem:[%s5 + $0xb0] sm:$0xff] %v404
  %456 = vst [vmem:[%s5 + $0xb8] sm:$0xff] %v407
  %457 = vst [vmem:[%s5 + $0xc0] sm:$0xff] %v410
  %458 = vst [vmem:[%s5 + $0xc8] sm:$0xff] %v413
  %459 = vst [vmem:[%s5 + $0xd0] sm:$0xff] %v416
  %460 = vst [vmem:[%s5 + $0xd8] sm:$0xff] %v419
  %461 = vst [vmem:[%s5 + $0xe0] sm:$0xff] %v422
  %462 = vst [vmem:[%s5 + $0xe8] sm:$0xff] %v425
  %463 = vst [vmem:[%s5 + $0xf0] sm:$0xff] %v428
  %464 = vst [vmem:[%s5 + $0xf8] sm:$0xff] %v431
  // Predicated region
  $region22: #{net_apply.1} parent=0 // pred_check
    _
  $region23: #{net_apply.1} parent=0 // pred_check_branch
    %466 = sbr.rel (0) target = $region25
  $region24: #{net_apply.1} parent=0 // pred_region
    _
  $region25: #{net_apply.1} parent=0 // pred_fallthru
    _
  // Predicated region
  $region26: #{net_apply.1} parent=0 // pred_check
    _
  $region27: #{net_apply.1} parent=0 // pred_check_branch
    %468 = sbr.rel (0) target = $region29
  $region28: #{net_apply.1} parent=0 // pred_region
    _
  $region29: #{net_apply.1} parent=0 // pred_fallthru
    _

</llo_original>
